<compile_context>
chip_gen: v7x
topology: tpu7x:2x2x1
jax: 0.10.0
libtpu: 0.0.40
codegen_flags: <defaults>
</compile_context>

<pallas_src>
import math
from functools import partial

import jax
import jax.numpy as jnp
import numpy as np
from jax.experimental import pallas as pl
from jax.experimental.pallas import tpu as pltpu

# ------------------------- model dimensions -------------------------
EMB_TOK = 16                        # nn.Embedding(_, 16)
EMB_DIM = 6 + 4 * (EMB_TOK + 1)     # 74 : forward-implied mlp1 input dim
EMB_HBM = 80                        # streamed activation width (74 padded to 80)
H1 = 128
H2 = 256
H3 = 128
OUT_DIM = 8                         # small out_dim for the synthetic run
PI = math.pi
SQRT_PI = math.sqrt(math.pi)


def _round_up(n, m):
    return ((n + m - 1) // m) * m


def _pick_tile(bs_pad, tm_max):
    """Batch tile: as large as possible (amortize ~0.35us/step pipeline
    overhead), but keep >=2 grid steps when the batch allows so the
    "parallel" batch axis can shard across the 2 TensorCores of a v7x chip.
    Don't shrink the tile below 512 rows for that."""
    tm = min(tm_max, bs_pad)
    while bs_pad // tm < 2 and tm > 512:
        tm = _round_up(tm // 2, 128)
    return max(tm, 128)


# ------------------------- Pallas kernel -------------------------
def _mlpe_kernel(emb_ref,
                 w13_ref, c1_ref,
                 w2_ref, c2_ref,
                 w3b_ref, c3_ref,
                 w4_ref, b4_ref,
                 out_ref):
    emb = emb_ref[...]                                                # [tm, 80] bf16

    # Fused emb-side matmul: w13 = [w1' | w3a'] (bias & pi folded offline).
    t13 = jnp.dot(emb, w13_ref[...], preferred_element_type=jnp.float32)  # [tm,256]
    t1 = t13[:, :H1]                                                  # lane-aligned slice
    t3a = t13[:, H1:]                                                 # lane-aligned slice

    # mlp1: Linear(74,128) + GaussianRBF(128)
    h1 = jnp.exp(-(t1 - c1_ref[...]) ** 2)                            # f32 [tm,128]

    # Linear(128,256) -> Dropout(identity) -> GaussianRBF(256)
    t2 = jnp.dot(h1.astype(jnp.bfloat16), w2_ref[...],
                 preferred_element_type=jnp.float32)
    h2 = jnp.exp(-(t2 - c2_ref[...]) ** 2)                            # f32 [tm,256]

    # mlp2: Linear(74+256,128) on cat(emb, h2) as split matmul,
    # Dropout(identity) -> GaussianRBF(128)
    t3 = t3a + jnp.dot(h2.astype(jnp.bfloat16), w3b_ref[...],
                       preferred_element_type=jnp.float32)
    h3 = jnp.exp(-(t3 - c3_ref[...]) ** 2)                            # f32 [tm,128]

    # Linear(128, 8): narrow output, stored un-padded (32 B/row HBM writeback).
    out_ref[...] = (jnp.dot(h3.astype(jnp.bfloat16), w4_ref[...],
                            preferred_element_type=jnp.float32)
                    + b4_ref[...])


def mlpe_pallas(emb_padded, kparams, *, tm):
    """emb_padded: [bs_pad, 80] bf16 (bs_pad % tm == 0). Returns [bs_pad, 8] f32."""
    bs_pad = emb_padded.shape[0]
    assert bs_pad % tm == 0 and emb_padded.shape[1] == EMB_HBM

    weight_order = ("w13", "c1", "w2", "c2", "w3b", "c3", "w4", "b4")
    weights = tuple(kparams[k] for k in weight_order)

    # Streamed activation tile; resident weights are single-buffered (their
    # block index is constant across the grid).
    in_specs = [pl.BlockSpec((tm, EMB_HBM), lambda i: (i, 0))]
    in_specs += [
        pl.BlockSpec(w.shape, lambda i: (0, 0), pipeline_mode=pl.Buffered(1))
        for w in weights
    ]
    out_spec = pl.BlockSpec((tm, OUT_DIM), lambda i: (i, 0))

    flops = 2 * bs_pad * (EMB_HBM * (H1 + H3) + H1 * H2 + H2 * H3 + H3 * OUT_DIM)
    transcendentals = bs_pad * (H1 + H2 + H3)
    bytes_accessed = (emb_padded.size * emb_padded.dtype.itemsize
                      + bs_pad * OUT_DIM * 4
                      + sum(int(w.size) * w.dtype.itemsize for w in weights))

    return pl.pallas_call(
        _mlpe_kernel,
        out_shape=jax.ShapeDtypeStruct((bs_pad, OUT_DIM), jnp.float32),
        grid_spec=pltpu.PrefetchScalarGridSpec(
            num_scalar_prefetch=0,
            grid=(bs_pad // tm,),
            in_specs=in_specs,
            out_specs=out_spec,
        ),
        compiler_params=pltpu.CompilerParams(
            dimension_semantics=("parallel",),        # batch tiles independent
            vmem_limit_bytes=32 * 1024 * 1024,        # safe on v5e/v6e/v7x
        ),
        cost_estimate=pl.CostEstimate(
            flops=int(flops),
            transcendentals=int(transcendentals),
            bytes_accessed=int(bytes_accessed),
        ),
    )(emb_padded, *weights)


# ------------------- parameter preparation (folding + padding) -------------------
def prepare_kernel_params(params):
    """Fold bias/pi into weights & RBF centers, fuse the two emb-side weights,
    pad rows to the 80-wide streamed activation (explicit zero rows 74..79),
    and cast matmul operands to bf16 (f32 accumulation happens on the MXU)."""
    s = jnp.float32(SQRT_PI)

    def pad_rows(w, rows):
        return jnp.pad(w, ((0, rows - w.shape[0]), (0, 0)))

    w1 = pad_rows(params["w1"] * s, EMB_HBM)                          # [80,128] f32
    w3a = pad_rows(params["w3a"] * s, EMB_HBM)                        # [80,128] f32
    w13 = jnp.concatenate([w1, w3a], axis=1).astype(jnp.bfloat16)     # [80,256]

    w2 = (params["w2"] * s).astype(jnp.bfloat16)                      # [128,256]
    w3b = (params["w3b"] * s).astype(jnp.bfloat16)                    # [256,128]
    w4 = params["w4"].astype(jnp.bfloat16)                            # [128,8]

    c1 = (s * (params["rbf1"] - params["b1"])).astype(jnp.float32)    # [1,128]
    c2 = (s * (params["rbf2"] - params["b2"])).astype(jnp.float32)    # [1,256]
    c3 = (s * (params["rbf3"] - params["b3"])).astype(jnp.float32)    # [1,128]
    b4 = params["b4"].astype(jnp.float32)                             # [1,8]

    return {"w13": w13, "c1": c1, "w2": w2, "c2": c2,
            "w3b": w3b, "c3": c3, "w4": w4, "b4": b4}


# ------------------------- JAX glue: embeddings + concat -------------------------
def embed_input(x, params):
    """x: [bs, >=10] float32 -> embedded_x: [bs, 74] float32 (matches torch forward).
    Note: jnp.take wraps out-of-range indices silently (torch nn.Embedding would
    error); inputs here are in range by construction."""
    sea = x[:, :6]

    def code(col, table):
        idx = jnp.trunc(col).astype(jnp.int32)           # torch.trunc(...).long()
        frac = col - jnp.trunc(col)                      # torch.frac
        return jnp.concatenate([jnp.take(table, idx, axis=0),
                                frac[:, None]], axis=-1)

    lat = code(x[:, 6], params["emb_lat"])
    lon = code(x[:, 7], params["emb_lon"])
    t1 = code(x[:, 8], params["emb_data"])
    t2 = code(x[:, 9], params["emb_data"])
    return jnp.concatenate([sea, lat, lon, t1, t2], axis=-1).astype(jnp.float32)


def mlpe_forward(x, params, *, tm=1024):
    """Full MLPE forward. tm = max batch tile (sweep 1024/2048)."""
    kparams = prepare_kernel_params(params)
    emb = embed_input(x, params)                               # [bs, 74] f32
    bs = emb.shape[0]

    bs_pad = _round_up(bs, 128)                                # lane/sublane floor
    tm_eff = _pick_tile(bs_pad, tm)
    bs_pad = _round_up(bs_pad, tm_eff)                         # at most tm-128 waste

    emb_p = jnp.pad(emb, ((0, bs_pad - bs), (0, EMB_HBM - EMB_DIM)))
    emb_p = emb_p.astype(jnp.bfloat16)                         # halve streamed bytes

    out_p = mlpe_pallas(emb_p, kparams, tm=tm_eff)             # [bs_pad, 8] f32
    return out_p[:bs]


# ------------------------- references -------------------------
def mlpe_reference_mixed(x, params):
    """Plain-JAX re-implementation of exactly the kernel's mixed-precision math
    (bf16 dot inputs, f32 accumulate, folded bias/pi, fused w13, 80-wide pad).
    Validates the Pallas lowering."""
    kp = prepare_kernel_params(params)
    emb = embed_input(x, params)
    emb_p = jnp.pad(emb, ((0, 0), (0, EMB_HBM - EMB_DIM))).astype(jnp.bfloat16)

    t13 = jnp.dot(emb_p, kp["w13"], preferred_element_type=jnp.float32)
    t1, t3a = t13[:, :H1], t13[:, H1:]
    h1 = jnp.exp(-(t1 - kp["c1"]) ** 2)
    t2 = jnp.dot(h1.astype(jnp.bfloat16), kp["w2"], preferred_element_type=jnp.float32)
    h2 = jnp.exp(-(t2 - kp["c2"]) ** 2)
    t3 = t3a + jnp.dot(h2.astype(jnp.bfloat16), kp["w3b"],
                       preferred_element_type=jnp.float32)
    h3 = jnp.exp(-(t3 - kp["c3"]) ** 2)
    return (jnp.dot(h3.astype(jnp.bfloat16), kp["w4"],
                    preferred_element_type=jnp.float32) + kp["b4"])


def mlpe_reference_f32(x, params):
    """Module-faithful f32 reference (un-folded, concat w3)."""
    emb = embed_input(x, params)
    h1 = emb @ params["w1"] + params["b1"]
    h1 = jnp.exp(-PI * (h1 - params["rbf1"]) ** 2)
    h2 = h1 @ params["w2"] + params["b2"]
    h2 = jnp.exp(-PI * (h2 - params["rbf2"]) ** 2)
    comb = jnp.concatenate([emb, h2], axis=-1)
    w3 = jnp.concatenate([params["w3a"], params["w3b"]], axis=0)
    h3 = comb @ w3 + params["b3"]
    h3 = jnp.exp(-PI * (h3 - params["rbf3"]) ** 2)
    return h3 @ params["w4"] + params["b4"]


# ------------------------- deterministic parameter init -------------------------
def init_params(key):
    ks = jax.random.split(key, 16)

    def linear(kw, kb, fan_in, fan_out):
        bound = 1.0 / math.sqrt(fan_in)
        w = jax.random.uniform(kw, (fan_in, fan_out), jnp.float32, -bound, bound)
        b = jax.random.uniform(kb, (1, fan_out), jnp.float32, -bound, bound)
        return w, b

    w1, b1 = linear(ks[0], ks[1], EMB_DIM, H1)
    w2, b2 = linear(ks[2], ks[3], H1, H2)
    w3, b3 = linear(ks[4], ks[5], EMB_DIM + H2, H3)
    w4, b4 = linear(ks[6], ks[7], H3, OUT_DIM)

    return {
        "emb_lat": jax.random.normal(ks[8], (180, EMB_TOK), jnp.float32),
        "emb_lon": jax.random.normal(ks[9], (360, EMB_TOK), jnp.float32),
        "emb_data": jax.random.normal(ks[10], (323, EMB_TOK), jnp.float32),
        "w1": w1, "b1": b1, "rbf1": jax.random.normal(ks[11], (1, H1), jnp.float32),
        "w2": w2, "b2": b2, "rbf2": jax.random.normal(ks[12], (1, H2), jnp.float32),
        "w3a": w3[:EMB_DIM], "w3b": w3[EMB_DIM:], "b3": b3,
        "rbf3": jax.random.normal(ks[13], (1, H3), jnp.float32),
        "w4": w4, "b4": b4,
    }


# ------------------------- main -------------------------
if __name__ == "__main__":
    key = jax.random.PRNGKey(0)
    kp_, k1, k2, k3, k4 = jax.random.split(key, 5)

    params = init_params(kp_)

    bs = 8
    sea = jax.random.normal(k1, (bs, 6), jnp.float32)
    lat = jax.random.uniform(k2, (bs, 1), jnp.float32, 0.0, 179.0)
    lon = jax.random.uniform(k3, (bs, 1), jnp.float32, 0.0, 359.0)
    tt = jax.random.uniform(k4, (bs, 2), jnp.float32, 0.0, 322.0)
    x = jnp.concatenate([sea, lat, lon, tt], axis=-1)            # [bs, 10]

    fwd = jax.jit(partial(mlpe_forward, params=params))
    out = jax.block_until_ready(fwd(x))

    ref_mixed = jax.block_until_ready(mlpe_reference_mixed(x, params))
    ref_f32 = jax.block_until_ready(mlpe_reference_f32(x, params))

    assert out.shape == (bs, OUT_DIM)
    # Kernel vs identical-math JAX reference: tight (validates the Pallas lowering).
    np.testing.assert_allclose(np.asarray(out), np.asarray(ref_mixed),
                               rtol=1e-3, atol=1e-3)
    # Kernel vs module-faithful f32 reference: loose (bf16-matmul mixed precision).
    np.testing.assert_allclose(np.asarray(out), np.asarray(ref_f32),
                               rtol=1e-1, atol=1e-1)
    print("KERNEL_OK")
</pallas_src>

<mosaic_0001>
module attributes {stable_mosaic.version = 11 : i64} {
  func.func @_mlpe_kernel(%arg0: i32, %arg1: memref<128x80xbf16, #tpu.memory_space<vmem>>, %arg2: memref<80x256xbf16, #tpu.memory_space<vmem>>, %arg3: memref<1x128xf32, #tpu.memory_space<vmem>>, %arg4: memref<128x256xbf16, #tpu.memory_space<vmem>>, %arg5: memref<1x256xf32, #tpu.memory_space<vmem>>, %arg6: memref<256x128xbf16, #tpu.memory_space<vmem>>, %arg7: memref<1x128xf32, #tpu.memory_space<vmem>>, %arg8: memref<128x8xbf16, #tpu.memory_space<vmem>>, %arg9: memref<1x8xf32, #tpu.memory_space<vmem>>, %arg10: memref<128x8xf32, #tpu.memory_space<vmem>>) attributes {dimension_semantics = [#tpu.dimension_semantics<parallel>], iteration_bounds = array<i64: 1>, scalar_prefetch = 0 : i64, scratch_operands = 0 : i64, tpu.core_type = #tpu.core_type<tc>, window_params = [{transform_indices = @transform_0, window_bounds = array<i64: 128, 80>}, {pipeline_mode = #tpu.pipeline_mode<synchronous>, transform_indices = @transform_1, window_bounds = array<i64: 80, 256>}, {pipeline_mode = #tpu.pipeline_mode<synchronous>, transform_indices = @transform_2, window_bounds = array<i64: 1, 128>}, {pipeline_mode = #tpu.pipeline_mode<synchronous>, transform_indices = @transform_3, window_bounds = array<i64: 128, 256>}, {pipeline_mode = #tpu.pipeline_mode<synchronous>, transform_indices = @transform_4, window_bounds = array<i64: 1, 256>}, {pipeline_mode = #tpu.pipeline_mode<synchronous>, transform_indices = @transform_5, window_bounds = array<i64: 256, 128>}, {pipeline_mode = #tpu.pipeline_mode<synchronous>, transform_indices = @transform_6, window_bounds = array<i64: 1, 128>}, {pipeline_mode = #tpu.pipeline_mode<synchronous>, transform_indices = @transform_7, window_bounds = array<i64: 128, 8>}, {pipeline_mode = #tpu.pipeline_mode<synchronous>, transform_indices = @transform_8, window_bounds = array<i64: 1, 8>}, {transform_indices = @transform_9, window_bounds = array<i64: 128, 8>}]} {
    %c0 = arith.constant 0 : index
    %c0_0 = arith.constant 0 : index
    %0 = vector.load %arg1[%c0, %c0_0] : memref<128x80xbf16, #tpu.memory_space<vmem>>, vector<128x80xbf16>
    %c0_1 = arith.constant 0 : index
    %c0_2 = arith.constant 0 : index
    %1 = vector.load %arg2[%c0_1, %c0_2] : memref<80x256xbf16, #tpu.memory_space<vmem>>, vector<80x256xbf16>
    %cst = arith.constant dense<0.000000e+00> : vector<128x256xf32>
    %2 = tpu.matmul %0, %1, %cst {dimension_numbers = #tpu.dot_dimension_numbers<[1], [0], [0], [1], [0, 0, 1, 1], [], []>} : vector<128x80xbf16>, vector<80x256xbf16>, vector<128x256xf32> -> vector<128x256xf32>
    %3 = vector.extract_strided_slice %2 {offsets = [0, 0], sizes = [128, 128], strides = [1, 1]} : vector<128x256xf32> to vector<128x128xf32>
    %4 = vector.extract_strided_slice %2 {offsets = [0, 128], sizes = [128, 128], strides = [1, 1]} : vector<128x256xf32> to vector<128x128xf32>
    %c0_3 = arith.constant 0 : index
    %c0_4 = arith.constant 0 : index
    %5 = vector.load %arg3[%c0_3, %c0_4] : memref<1x128xf32, #tpu.memory_space<vmem>>, vector<1x128xf32>
    %6 = vector.broadcast %5 : vector<1x128xf32> to vector<128x128xf32>
    %7 = arith.subf %3, %6 : vector<128x128xf32>
    %8 = arith.mulf %7, %7 : vector<128x128xf32>
    %cst_5 = arith.constant 0.000000e+00 : f32
    %9 = vector.broadcast %cst_5 : f32 to vector<128x128xf32>
    %10 = arith.subf %9, %8 : vector<128x128xf32>
    %11 = math.exp %10 : vector<128x128xf32>
    %12 = arith.truncf %11 : vector<128x128xf32> to vector<128x128xbf16>
    %c0_6 = arith.constant 0 : index
    %c0_7 = arith.constant 0 : index
    %13 = vector.load %arg4[%c0_6, %c0_7] : memref<128x256xbf16, #tpu.memory_space<vmem>>, vector<128x256xbf16>
    %cst_8 = arith.constant dense<0.000000e+00> : vector<128x256xf32>
    %14 = tpu.matmul %12, %13, %cst_8 {dimension_numbers = #tpu.dot_dimension_numbers<[1], [0], [0], [1], [0, 0, 1, 1], [], []>} : vector<128x128xbf16>, vector<128x256xbf16>, vector<128x256xf32> -> vector<128x256xf32>
    %c0_9 = arith.constant 0 : index
    %c0_10 = arith.constant 0 : index
    %15 = vector.load %arg5[%c0_9, %c0_10] : memref<1x256xf32, #tpu.memory_space<vmem>>, vector<1x256xf32>
    %16 = vector.broadcast %15 : vector<1x256xf32> to vector<128x256xf32>
    %17 = arith.subf %14, %16 : vector<128x256xf32>
    %18 = arith.mulf %17, %17 : vector<128x256xf32>
    %cst_11 = arith.constant 0.000000e+00 : f32
    %19 = vector.broadcast %cst_11 : f32 to vector<128x256xf32>
    %20 = arith.subf %19, %18 : vector<128x256xf32>
    %21 = math.exp %20 : vector<128x256xf32>
    %22 = arith.truncf %21 : vector<128x256xf32> to vector<128x256xbf16>
    %c0_12 = arith.constant 0 : index
    %c0_13 = arith.constant 0 : index
    %23 = vector.load %arg6[%c0_12, %c0_13] : memref<256x128xbf16, #tpu.memory_space<vmem>>, vector<256x128xbf16>
    %cst_14 = arith.constant dense<0.000000e+00> : vector<128x128xf32>
    %24 = tpu.matmul %22, %23, %cst_14 {dimension_numbers = #tpu.dot_dimension_numbers<[1], [0], [0], [1], [0, 0, 1, 1], [], []>} : vector<128x256xbf16>, vector<256x128xbf16>, vector<128x128xf32> -> vector<128x128xf32>
    %25 = arith.addf %4, %24 : vector<128x128xf32>
    %c0_15 = arith.constant 0 : index
    %c0_16 = arith.constant 0 : index
    %26 = vector.load %arg7[%c0_15, %c0_16] : memref<1x128xf32, #tpu.memory_space<vmem>>, vector<1x128xf32>
    %27 = vector.broadcast %26 : vector<1x128xf32> to vector<128x128xf32>
    %28 = arith.subf %25, %27 : vector<128x128xf32>
    %29 = arith.mulf %28, %28 : vector<128x128xf32>
    %cst_17 = arith.constant 0.000000e+00 : f32
    %30 = vector.broadcast %cst_17 : f32 to vector<128x128xf32>
    %31 = arith.subf %30, %29 : vector<128x128xf32>
    %32 = math.exp %31 : vector<128x128xf32>
    %33 = arith.truncf %32 : vector<128x128xf32> to vector<128x128xbf16>
    %c0_18 = arith.constant 0 : index
    %c0_19 = arith.constant 0 : index
    %34 = vector.load %arg8[%c0_18, %c0_19] : memref<128x8xbf16, #tpu.memory_space<vmem>>, vector<128x8xbf16>
    %cst_20 = arith.constant dense<0.000000e+00> : vector<128x8xf32>
    %35 = tpu.matmul %33, %34, %cst_20 {dimension_numbers = #tpu.dot_dimension_numbers<[1], [0], [0], [1], [0, 0, 1, 1], [], []>} : vector<128x128xbf16>, vector<128x8xbf16>, vector<128x8xf32> -> vector<128x8xf32>
    %c0_21 = arith.constant 0 : index
    %c0_22 = arith.constant 0 : index
    %36 = vector.load %arg9[%c0_21, %c0_22] : memref<1x8xf32, #tpu.memory_space<vmem>>, vector<1x8xf32>
    %37 = vector.broadcast %36 : vector<1x8xf32> to vector<128x8xf32>
    %38 = arith.addf %35, %37 : vector<128x8xf32>
    %c0_23 = arith.constant 0 : index
    %c0_24 = arith.constant 0 : index
    %39 = vector.load %arg10[%c0_23, %c0_24] : memref<128x8xf32, #tpu.memory_space<vmem>>, vector<128x8xf32>
    tpu.vector_store %arg10[%c0_23, %c0_24], %38 {strides = array<i32>} : memref<128x8xf32, #tpu.memory_space<vmem>>, vector<128x8xf32>,
    return
  }
  func.func @transform_0(%arg0: i32) -> (i32, i32) {
    %c0_i32 = arith.constant 0 : i32
    %c0_i32_0 = arith.constant 0 : i32
    return %arg0, %c0_i32 : i32, i32
  }
  func.func @transform_1(%arg0: i32) -> (i32, i32) {
    %c0_i32 = arith.constant 0 : i32
    %c0_i32_0 = arith.constant 0 : i32
    %c0_i32_1 = arith.constant 0 : i32
    return %c0_i32, %c0_i32_0 : i32, i32
  }
  func.func @transform_2(%arg0: i32) -> (i32, i32) {
    %c0_i32 = arith.constant 0 : i32
    %c0_i32_0 = arith.constant 0 : i32
    %c0_i32_1 = arith.constant 0 : i32
    return %c0_i32, %c0_i32_0 : i32, i32
  }
  func.func @transform_3(%arg0: i32) -> (i32, i32) {
    %c0_i32 = arith.constant 0 : i32
    %c0_i32_0 = arith.constant 0 : i32
    %c0_i32_1 = arith.constant 0 : i32
    return %c0_i32, %c0_i32_0 : i32, i32
  }
  func.func @transform_4(%arg0: i32) -> (i32, i32) {
    %c0_i32 = arith.constant 0 : i32
    %c0_i32_0 = arith.constant 0 : i32
    %c0_i32_1 = arith.constant 0 : i32
    return %c0_i32, %c0_i32_0 : i32, i32
  }
  func.func @transform_5(%arg0: i32) -> (i32, i32) {
    %c0_i32 = arith.constant 0 : i32
    %c0_i32_0 = arith.constant 0 : i32
    %c0_i32_1 = arith.constant 0 : i32
    return %c0_i32, %c0_i32_0 : i32, i32
  }
  func.func @transform_6(%arg0: i32) -> (i32, i32) {
    %c0_i32 = arith.constant 0 : i32
    %c0_i32_0 = arith.constant 0 : i32
    %c0_i32_1 = arith.constant 0 : i32
    return %c0_i32, %c0_i32_0 : i32, i32
  }
  func.func @transform_7(%arg0: i32) -> (i32, i32) {
    %c0_i32 = arith.constant 0 : i32
    %c0_i32_0 = arith.constant 0 : i32
    %c0_i32_1 = arith.constant 0 : i32
    return %c0_i32, %c0_i32_0 : i32, i32
  }
  func.func @transform_8(%arg0: i32) -> (i32, i32) {
    %c0_i32 = arith.constant 0 : i32
    %c0_i32_0 = arith.constant 0 : i32
    %c0_i32_1 = arith.constant 0 : i32
    return %c0_i32, %c0_i32_0 : i32, i32
  }
  func.func @transform_9(%arg0: i32) -> (i32, i32) {
    %c0_i32 = arith.constant 0 : i32
    %c0_i32_0 = arith.constant 0 : i32
    return %arg0, %c0_i32 : i32, i32
  }
}

</mosaic_0001>

<llo_original>
// kernel: mlpe_forward.1
$region0: #{mlpe_forward.1}
  #allocation0 [shape = 'u32[]', space=smem, size = 0x4, offset = 0x4, fixed_abs, tag = 'smem constant byte address 0x4 - core index']
  #allocation1 [shape = 'u32[144,128]{1,0:T(1,128)}', space=vmem, size = 0x12000, scoped, tag = 'internal scratch']
  %s0 = inlined_call_operand.vmem [shape: bf16[128,80], index: 0, kind: input, shape index: {}]
  %s1 = inlined_call_operand.vmem [shape: bf16[80,256], index: 1, kind: input, shape index: {}]
  %s2 = inlined_call_operand.vmem [shape: f32[1,128], index: 2, kind: input, shape index: {}]
  %s3 = inlined_call_operand.vmem [shape: bf16[128,256], index: 3, kind: input, shape index: {}]
  %s4 = inlined_call_operand.vmem [shape: f32[1,256], index: 4, kind: input, shape index: {}]
  %s5 = inlined_call_operand.vmem [shape: bf16[256,128], index: 5, kind: input, shape index: {}]
  %s6 = inlined_call_operand.vmem [shape: f32[1,128], index: 6, kind: input, shape index: {}]
  %s7 = inlined_call_operand.vmem [shape: bf16[128,8], index: 7, kind: input, shape index: {}]
  %s8 = inlined_call_operand.vmem [shape: f32[1,8], index: 8, kind: input, shape index: {}]
  %s9 = inlined_call_operand.vmem [shape: f32[128,8], index: 9, kind: output, shape index: {}]
  %s10 = sld [smem:[#allocation0]]
  $region46: #{mlpe_forward.1} parent=0
    _
  %s12 = ssub.s32 1, %s10
  %s13 = scalar_select 0, %s12, %s10
  // Predicated region
  $region2: #{mlpe_forward.1} parent=0 // pred_check
    _
  $region3: #{mlpe_forward.1} parent=0 // pred_check_branch
    %15 = sbr.rel (0) target = $region5
  $region4: #{mlpe_forward.1} parent=0 // pred_region
    _
  $region5: #{mlpe_forward.1} parent=0 // pred_fallthru
    _
  // Predicated region
  $region6: #{mlpe_forward.1} parent=0 // pred_check
    _
  $region7: #{mlpe_forward.1} parent=0 // pred_check_branch
    %17 = sbr.rel (0) target = $region9
  $region8: #{mlpe_forward.1} parent=0 // pred_region
    _
  $region9: #{mlpe_forward.1} parent=0 // pred_fallthru
    _
  // Predicated region
  $region10: #{mlpe_forward.1} parent=0 // pred_check
    _
  $region11: #{mlpe_forward.1} parent=0 // pred_check_branch
    %19 = sbr.rel (0) target = $region13
  $region12: #{mlpe_forward.1} parent=0 // pred_region
    _
  $region13: #{mlpe_forward.1} parent=0 // pred_fallthru
    _
  // Predicated region
  $region14: #{mlpe_forward.1} parent=0 // pred_check
    _
  $region15: #{mlpe_forward.1} parent=0 // pred_check_branch
    %21 = sbr.rel (0) target = $region17
  $region16: #{mlpe_forward.1} parent=0 // pred_region
    _
  $region17: #{mlpe_forward.1} parent=0 // pred_fallthru
    _
  // Predicated region
  $region18: #{mlpe_forward.1} parent=0 // pred_check
    _
  $region19: #{mlpe_forward.1} parent=0 // pred_check_branch
    %23 = sbr.rel (0) target = $region21
  $region20: #{mlpe_forward.1} parent=0 // pred_region
    _
  $region21: #{mlpe_forward.1} parent=0 // pred_fallthru
    _
  // Predicated region
  $region22: #{mlpe_forward.1} parent=0 // pred_check
    _
  $region23: #{mlpe_forward.1} parent=0 // pred_check_branch
    %25 = sbr.rel (0) target = $region25
  $region24: #{mlpe_forward.1} parent=0 // pred_region
    _
  $region25: #{mlpe_forward.1} parent=0 // pred_fallthru
    _
  // Predicated region
  $region26: #{mlpe_forward.1} parent=0 // pred_check
    _
  $region27: #{mlpe_forward.1} parent=0 // pred_check_branch
    %27 = sbr.rel (0) target = $region29
  $region28: #{mlpe_forward.1} parent=0 // pred_region
    _
  $region29: #{mlpe_forward.1} parent=0 // pred_fallthru
    _
  // Predicated region
  $region30: #{mlpe_forward.1} parent=0 // pred_check
    _
  $region31: #{mlpe_forward.1} parent=0 // pred_check_branch
    %29 = sbr.rel (0) target = $region33
  $region32: #{mlpe_forward.1} parent=0 // pred_region
    _
  $region33: #{mlpe_forward.1} parent=0 // pred_fallthru
    _
  // Predicated region
  $region34: #{mlpe_forward.1} parent=0 // pred_check
    _
  $region35: #{mlpe_forward.1} parent=0 // pred_check_branch
    %31 = sbr.rel (0) target = $region37
  $region36: #{mlpe_forward.1} parent=0 // pred_region
    _
  $region37: #{mlpe_forward.1} parent=0 // pred_fallthru
    _
  %v33 = vld [vmem:[%s0] sm:$0xf]
  %v34 = vld [vmem:[%s0 + $0x4] sm:$0xf]
  %v35 = vld [vmem:[%s0 + $0x8] sm:$0xf]
  %v36 = vld [vmem:[%s0 + $0xc] sm:$0xf]
  %v37 = vld [vmem:[%s0 + $0x10] sm:$0xf]
  %v38 = vld [vmem:[%s0 + $0x14] sm:$0xf]
  %v39 = vld [vmem:[%s0 + $0x18] sm:$0xf]
  %v40 = vld [vmem:[%s0 + $0x1c] sm:$0xf]
  %v41 = vld [vmem:[%s0 + $0x20] sm:$0xf]
  %v42 = vld [vmem:[%s0 + $0x24] sm:$0xf]
  %v43 = vld [vmem:[%s0 + $0x28] sm:$0xf]
  %v44 = vld [vmem:[%s0 + $0x2c] sm:$0xf]
  %v45 = vld [vmem:[%s0 + $0x30] sm:$0xf]
  %v46 = vld [vmem:[%s0 + $0x34] sm:$0xf]
  %v47 = vld [vmem:[%s0 + $0x38] sm:$0xf]
  %v48 = vld [vmem:[%s0 + $0x3c] sm:$0xf]
  %v49 = vld [vmem:[%s1] sm:$0xff]
  %v50 = vld [vmem:[%s1 + $0x8] sm:$0xff]
  %v51 = vld [vmem:[%s1 + $0x10] sm:$0xff]
  %v52 = vld [vmem:[%s1 + $0x18] sm:$0xff]
  %v53 = vld [vmem:[%s1 + $0x20] sm:$0xff]
  %v54 = vld [vmem:[%s1 + $0x28] sm:$0xff]
  %v55 = vld [vmem:[%s1 + $0x30] sm:$0xff]
  %v56 = vld [vmem:[%s1 + $0x38] sm:$0xff]
  %v57 = vld [vmem:[%s1 + $0x40] sm:$0xff]
  %v58 = vld [vmem:[%s1 + $0x48] sm:$0xff]
  %v75 = vunpack.c.l.b16 %v33
  %v76 = vunpack.c.l.b16 %v34
  %v77 = vunpack.c.l.b16 %v35
  %v78 = vunpack.c.l.b16 %v36
  %v79 = vunpack.c.l.b16 %v37
  %v80 = vunpack.c.l.b16 %v38
  %v81 = vunpack.c.l.b16 %v39
  %v82 = vunpack.c.l.b16 %v40
  %v83 = vunpack.c.l.b16 %v41
  %v84 = vunpack.c.l.b16 %v42
  %v85 = vunpack.c.l.b16 %v43
  %v86 = vunpack.c.l.b16 %v44
  %v87 = vunpack.c.l.b16 %v45
  %v88 = vunpack.c.l.b16 %v46
  %v89 = vunpack.c.l.b16 %v47
  %v90 = vunpack.c.l.b16 %v48
  %v91 = vpack.c.b16 %v76, %v75
  %v92 = vpack.c.b16 %v78, %v77
  %v93 = vpack.c.b16 %v80, %v79
  %v94 = vpack.c.b16 %v82, %v81
  %v95 = vpack.c.b16 %v84, %v83
  %v96 = vpack.c.b16 %v86, %v85
  %v97 = vpack.c.b16 %v88, %v87
  %v98 = vpack.c.b16 %v90, %v89
  %v109 = vunpack.c.l.b16 %v49
  %v110 = vunpack.c.h.b16 %v49
  %v111 = vunpack.c.l.b16 %v50
  %v112 = vunpack.c.h.b16 %v50
  %v113 = vunpack.c.l.b16 %v51
  %v114 = vunpack.c.h.b16 %v51
  %v115 = vunpack.c.l.b16 %v52
  %v116 = vunpack.c.h.b16 %v52
  %v117 = vunpack.c.l.b16 %v53
  %v118 = vunpack.c.h.b16 %v53
  %v119 = vunpack.c.l.b16 %v54
  %v120 = vunpack.c.h.b16 %v54
  %v121 = vunpack.c.l.b16 %v55
  %v122 = vunpack.c.h.b16 %v55
  %v123 = vunpack.c.l.b16 %v56
  %v124 = vunpack.c.h.b16 %v56
  %v125 = vunpack.c.l.b16 %v57
  %v126 = vunpack.c.h.b16 %v57
  %v127 = vunpack.c.l.b16 %v58
  %v128 = vunpack.c.h.b16 %v58
  %v129 = vpack.c.b16 %v111, %v109
  %v130 = vpack.c.b16 %v112, %v110
  %v131 = vpack.c.b16 %v115, %v113
  %v132 = vpack.c.b16 %v116, %v114
  %v133 = vpack.c.b16 %v119, %v117
  %v134 = vpack.c.b16 %v120, %v118
  %v135 = vpack.c.b16 %v123, %v121
  %v136 = vpack.c.b16 %v124, %v122
  %v137 = vpack.c.b16 %v127, %v125
  %v138 = vpack.c.b16 %v128, %v126
  %vm149 = vcmask 654336
  %v151 = vsel %vm149, %v91, 0
  %v154 = vsel %vm149, %v92, 0
  %v157 = vsel %vm149, %v93, 0
  %v160 = vsel %vm149, %v94, 0
  %v163 = vsel %vm149, %v95, 0
  %v166 = vsel %vm149, %v96, 0
  %v169 = vsel %vm149, %v97, 0
  %v172 = vsel %vm149, %v98, 0
  %174 = vmatprep.subr.bf16.mxu0 %v130
  %175 = vmatpush1.bf16.msra.mxu0 %v129
  %176 = vmatprep.subr.bf16.mxu0 %v132
  %177 = vmatpush1.bf16.msra.mxu0 %v131
  %178 = vmatprep.subr.bf16.mxu0 %v134
  %179 = vmatpush1.bf16.msra.mxu0 %v133
  %180 = vmatprep.subr.bf16.mxu0 %v136
  %181 = vmatpush1.bf16.msra.mxu0 %v135
  %182 = vmatprep.subr.bf16.mxu0 %v138
  %183 = vmatpush1.bf16.msra.mxu0 %v137
  %184 = vmatprep.subr.bf16.mxu0 0
  %185 = vmatpush1.bf16.msra.mxu0 0
  %186 = vmatprep.subr.bf16.mxu0 0
  %187 = vmatpush1.bf16.msra.mxu0 0
  %188 = vmatprep.subr.bf16.mxu0 0
  %189 = vmatpush1.bf16.msra.mxu0 0
  %190 = vmatprep.subr.bf16.mxu0 0
  %191 = vmatpush1.bf16.msra.mxu0 0
  %192 = vmatprep.subr.bf16.mxu0 0
  %193 = vmatpush1.bf16.msra.mxu0 0
  %194 = vmatprep.subr.bf16.mxu0 0
  %195 = vmatpush1.bf16.msra.mxu0 0
  %196 = vmatprep.subr.bf16.mxu0 0
  %197 = vmatpush1.bf16.msra.mxu0 0
  %198 = vmatprep.subr.bf16.mxu0 0
  %199 = vmatpush1.bf16.msra.mxu0 0
  %200 = vmatprep.subr.bf16.mxu0 0
  %201 = vmatpush1.bf16.msra.mxu0 0
  %202 = vmatprep.subr.bf16.mxu0 0
  %203 = vmatpush1.bf16.msra.mxu0 0
  %204 = vmatprep.subr.bf16.mxu0 0
  %205 = vmatpush1.bf16.msra.mxu0 0
  %206 = vmatprep.mubr.bf16.mxu0 0
  %207 = vmatmul.mubr.bf16.gmra.mrb[0].mxu0 %v151
  %v208 = vpop.f32.mrb[0].mxu0
  %v209 = vadd.f32 0.0, %v208
  %v210 = vpop.f32.mrb[0].mxu0
  %v211 = vadd.f32 0.0, %v210
  %v212 = vpop.f32.mrb[0].mxu0
  %v213 = vadd.f32 0.0, %v212
  %v214 = vpop.f32.mrb[0].mxu0
  %v215 = vadd.f32 0.0, %v214
  %216 = vmatprep.mubr.bf16.mxu0 0
  %217 = vmatmul.mubr.bf16.gmra.mrb[0].mxu0 %v154
  %v218 = vpop.f32.mrb[0].mxu0
  %v219 = vadd.f32 0.0, %v218
  %v220 = vpop.f32.mrb[0].mxu0
  %v221 = vadd.f32 0.0, %v220
  %v222 = vpop.f32.mrb[0].mxu0
  %v223 = vadd.f32 0.0, %v222
  %v224 = vpop.f32.mrb[0].mxu0
  %v225 = vadd.f32 0.0, %v224
  %226 = vmatprep.mubr.bf16.mxu0 0
  %227 = vmatmul.mubr.bf16.gmra.mrb[0].mxu0 %v157
  %v228 = vpop.f32.mrb[0].mxu0
  %v229 = vadd.f32 0.0, %v228
  %v230 = vpop.f32.mrb[0].mxu0
  %v231 = vadd.f32 0.0, %v230
  %v232 = vpop.f32.mrb[0].mxu0
  %v233 = vadd.f32 0.0, %v232
  %v234 = vpop.f32.mrb[0].mxu0
  %v235 = vadd.f32 0.0, %v234
  %236 = vmatprep.mubr.bf16.mxu0 0
  %237 = vmatmul.mubr.bf16.gmra.mrb[0].mxu0 %v160
  %v238 = vpop.f32.mrb[0].mxu0
  %v239 = vadd.f32 0.0, %v238
  %v240 = vpop.f32.mrb[0].mxu0
  %v241 = vadd.f32 0.0, %v240
  %v242 = vpop.f32.mrb[0].mxu0
  %v243 = vadd.f32 0.0, %v242
  %v244 = vpop.f32.mrb[0].mxu0
  %v245 = vadd.f32 0.0, %v244
  %246 = vmatprep.mubr.bf16.mxu0 0
  %247 = vmatmul.mubr.bf16.gmra.mrb[0].mxu0 %v163
  %v248 = vpop.f32.mrb[0].mxu0
  %v249 = vadd.f32 0.0, %v248
  %v250 = vpop.f32.mrb[0].mxu0
  %v251 = vadd.f32 0.0, %v250
  %v252 = vpop.f32.mrb[0].mxu0
  %v253 = vadd.f32 0.0, %v252
  %v254 = vpop.f32.mrb[0].mxu0
  %v255 = vadd.f32 0.0, %v254
  %256 = vmatprep.mubr.bf16.mxu0 0
  %257 = vmatmul.mubr.bf16.gmra.mrb[0].mxu0 %v166
  %v258 = vpop.f32.mrb[0].mxu0
  %v259 = vadd.f32 0.0, %v258
  %v260 = vpop.f32.mrb[0].mxu0
  %v261 = vadd.f32 0.0, %v260
  %v262 = vpop.f32.mrb[0].mxu0
  %v263 = vadd.f32 0.0, %v262
  %v264 = vpop.f32.mrb[0].mxu0
  %v265 = vadd.f32 0.0, %v264
  %266 = vmatprep.mubr.bf16.mxu0 0
  %267 = vmatmul.mubr.bf16.gmra.mrb[0].mxu0 %v169
  %v268 = vpop.f32.mrb[0].mxu0
  %v269 = vadd.f32 0.0, %v268
  %v270 = vpop.f32.mrb[0].mxu0
  %v271 = vadd.f32 0.0, %v270
  %v272 = vpop.f32.mrb[0].mxu0
  %v273 = vadd.f32 0.0, %v272
  %v274 = vpop.f32.mrb[0].mxu0
  %v275 = vadd.f32 0.0, %v274
  %276 = vmatprep.mubr.bf16.mxu0 0
  %277 = vmatmul.mubr.bf16.gmra.mrb[0].mxu0 %v172
  %v278 = vpop.f32.mrb[0].mxu0
  %v279 = vadd.f32 0.0, %v278
  %v280 = vpop.f32.mrb[0].mxu0
  %v281 = vadd.f32 0.0, %v280
  %v282 = vpop.f32.mrb[0].mxu0
  %v283 = vadd.f32 0.0, %v282
  %v284 = vpop.f32.mrb[0].mxu0
  %v285 = vadd.f32 0.0, %v284
  %286 = vdwg.mxu0
  %v287 = vld [vmem:[%s2] sm:$0x1]
  %v289 = vlaneseq
  %v290 = vshrl.u32 %v289, 7
  %v291 = vsub.s32 0, %v290
  %v292 = vrot.slane %v287, %v291
  %v294 = vsub.f32 %v209, %v292
  %v295 = vsub.f32 %v213, %v292
  %v296 = vsub.f32 %v219, %v292
  %v297 = vsub.f32 %v223, %v292
  %v298 = vsub.f32 %v229, %v292
  %v299 = vsub.f32 %v233, %v292
  %v300 = vsub.f32 %v239, %v292
  %v301 = vsub.f32 %v243, %v292
  %v302 = vsub.f32 %v249, %v292
  %v303 = vsub.f32 %v253, %v292
  %v304 = vsub.f32 %v259, %v292
  %v305 = vsub.f32 %v263, %v292
  %v306 = vsub.f32 %v269, %v292
  %v307 = vsub.f32 %v273, %v292
  %v308 = vsub.f32 %v279, %v292
  %v309 = vsub.f32 %v283, %v292
  %v310 = vmul.f32 %v294, %v294
  %v311 = vmul.f32 %v295, %v295
  %v312 = vmul.f32 %v296, %v296
  %v313 = vmul.f32 %v297, %v297
  %v314 = vmul.f32 %v298, %v298
  %v315 = vmul.f32 %v299, %v299
  %v316 = vmul.f32 %v300, %v300
  %v317 = vmul.f32 %v301, %v301
  %v318 = vmul.f32 %v302, %v302
  %v319 = vmul.f32 %v303, %v303
  %v320 = vmul.f32 %v304, %v304
  %v321 = vmul.f32 %v305, %v305
  %v322 = vmul.f32 %v306, %v306
  %v323 = vmul.f32 %v307, %v307
  %v324 = vmul.f32 %v308, %v308
  %v325 = vmul.f32 %v309, %v309
  %v326 = vsub.f32 0.0, %v310
  %v327 = vsub.f32 0.0, %v311
  %v328 = vsub.f32 0.0, %v312
  %v329 = vsub.f32 0.0, %v313
  %v330 = vsub.f32 0.0, %v314
  %v331 = vsub.f32 0.0, %v315
  %v332 = vsub.f32 0.0, %v316
  %v333 = vsub.f32 0.0, %v317
  %v334 = vsub.f32 0.0, %v318
  %v335 = vsub.f32 0.0, %v319
  %v336 = vsub.f32 0.0, %v320
  %v337 = vsub.f32 0.0, %v321
  %v338 = vsub.f32 0.0, %v322
  %v339 = vsub.f32 0.0, %v323
  %v340 = vsub.f32 0.0, %v324
  %v341 = vsub.f32 0.0, %v325
  %v342 = vmul.f32 %v326, 1.442695
  %v343 = vpow.pop %v342
  %v344 = vmul.f32 %v327, 1.442695
  %v345 = vpow.pop %v344
  %v346 = vmul.f32 %v328, 1.442695
  %v347 = vpow.pop %v346
  %v348 = vmul.f32 %v329, 1.442695
  %v349 = vpow.pop %v348
  %v350 = vmul.f32 %v330, 1.442695
  %v351 = vpow.pop %v350
  %v352 = vmul.f32 %v331, 1.442695
  %v353 = vpow.pop %v352
  %v354 = vmul.f32 %v332, 1.442695
  %v355 = vpow.pop %v354
  %v356 = vmul.f32 %v333, 1.442695
  %v357 = vpow.pop %v356
  %v358 = vmul.f32 %v334, 1.442695
  %v359 = vpow.pop %v358
  %v360 = vmul.f32 %v335, 1.442695
  %v361 = vpow.pop %v360
  %v362 = vmul.f32 %v336, 1.442695
  %v363 = vpow.pop %v362
  %v364 = vmul.f32 %v337, 1.442695
  %v365 = vpow.pop %v364
  %v366 = vmul.f32 %v338, 1.442695
  %v367 = vpow.pop %v366
  %v368 = vmul.f32 %v339, 1.442695
  %v369 = vpow.pop %v368
  %v370 = vmul.f32 %v340, 1.442695
  %v371 = vpow.pop %v370
  %v372 = vmul.f32 %v341, 1.442695
  %v373 = vpow.pop %v372
  %v374 = vpack.c.bf16 %v345, %v343
  %v375 = vpack.c.bf16 %v349, %v347
  %v376 = vpack.c.bf16 %v353, %v351
  %v377 = vpack.c.bf16 %v357, %v355
  %v378 = vpack.c.bf16 %v361, %v359
  %v379 = vpack.c.bf16 %v365, %v363
  %v380 = vpack.c.bf16 %v369, %v367
  %v381 = vpack.c.bf16 %v373, %v371
  %v382 = vld [vmem:[%s3] sm:$0xff]
  %v383 = vld [vmem:[%s3 + $0x8] sm:$0xff]
  %v384 = vld [vmem:[%s3 + $0x10] sm:$0xff]
  %v385 = vld [vmem:[%s3 + $0x18] sm:$0xff]
  %v386 = vld [vmem:[%s3 + $0x20] sm:$0xff]
  %v387 = vld [vmem:[%s3 + $0x28] sm:$0xff]
  %v388 = vld [vmem:[%s3 + $0x30] sm:$0xff]
  %v389 = vld [vmem:[%s3 + $0x38] sm:$0xff]
  %v390 = vld [vmem:[%s3 + $0x40] sm:$0xff]
  %v391 = vld [vmem:[%s3 + $0x48] sm:$0xff]
  %v392 = vld [vmem:[%s3 + $0x50] sm:$0xff]
  %v393 = vld [vmem:[%s3 + $0x58] sm:$0xff]
  %v394 = vld [vmem:[%s3 + $0x60] sm:$0xff]
  %v395 = vld [vmem:[%s3 + $0x68] sm:$0xff]
  %v396 = vld [vmem:[%s3 + $0x70] sm:$0xff]
  %v397 = vld [vmem:[%s3 + $0x78] sm:$0xff]
  %v414 = vunpack.c.l.b16 %v382
  %v415 = vunpack.c.h.b16 %v382
  %v416 = vunpack.c.l.b16 %v383
  %v417 = vunpack.c.h.b16 %v383
  %v418 = vunpack.c.l.b16 %v384
  %v419 = vunpack.c.h.b16 %v384
  %v420 = vunpack.c.l.b16 %v385
  %v421 = vunpack.c.h.b16 %v385
  %v422 = vunpack.c.l.b16 %v386
  %v423 = vunpack.c.h.b16 %v386
  %v424 = vunpack.c.l.b16 %v387
  %v425 = vunpack.c.h.b16 %v387
  %v426 = vunpack.c.l.b16 %v388
  %v427 = vunpack.c.h.b16 %v388
  %v428 = vunpack.c.l.b16 %v389
  %v429 = vunpack.c.h.b16 %v389
  %v430 = vunpack.c.l.b16 %v390
  %v431 = vunpack.c.h.b16 %v390
  %v432 = vunpack.c.l.b16 %v391
  %v433 = vunpack.c.h.b16 %v391
  %v434 = vunpack.c.l.b16 %v392
  %v435 = vunpack.c.h.b16 %v392
  %v436 = vunpack.c.l.b16 %v393
  %v437 = vunpack.c.h.b16 %v393
  %v438 = vunpack.c.l.b16 %v394
  %v439 = vunpack.c.h.b16 %v394
  %v440 = vunpack.c.l.b16 %v395
  %v441 = vunpack.c.h.b16 %v395
  %v442 = vunpack.c.l.b16 %v396
  %v443 = vunpack.c.h.b16 %v396
  %v444 = vunpack.c.l.b16 %v397
  %v445 = vunpack.c.h.b16 %v397
  %v446 = vpack.c.b16 %v416, %v414
  %v447 = vpack.c.b16 %v417, %v415
  %v448 = vpack.c.b16 %v420, %v418
  %v449 = vpack.c.b16 %v421, %v419
  %v450 = vpack.c.b16 %v424, %v422
  %v451 = vpack.c.b16 %v425, %v423
  %v452 = vpack.c.b16 %v428, %v426
  %v453 = vpack.c.b16 %v429, %v427
  %v454 = vpack.c.b16 %v432, %v430
  %v455 = vpack.c.b16 %v433, %v431
  %v456 = vpack.c.b16 %v436, %v434
  %v457 = vpack.c.b16 %v437, %v435
  %v458 = vpack.c.b16 %v440, %v438
  %v459 = vpack.c.b16 %v441, %v439
  %v460 = vpack.c.b16 %v444, %v442
  %v461 = vpack.c.b16 %v445, %v443
  %478 = vmatprep.subr.bf16.mxu0 %v447
  %479 = vmatpush1.bf16.msra.mxu0 %v446
  %480 = vmatprep.subr.bf16.mxu0 %v449
  %481 = vmatpush1.bf16.msra.mxu0 %v448
  %482 = vmatprep.subr.bf16.mxu0 %v451
  %483 = vmatpush1.bf16.msra.mxu0 %v450
  %484 = vmatprep.subr.bf16.mxu0 %v453
  %485 = vmatpush1.bf16.msra.mxu0 %v452
  %486 = vmatprep.subr.bf16.mxu0 %v455
  %487 = vmatpush1.bf16.msra.mxu0 %v454
  %488 = vmatprep.subr.bf16.mxu0 %v457
  %489 = vmatpush1.bf16.msra.mxu0 %v456
  %490 = vmatprep.subr.bf16.mxu0 %v459
  %491 = vmatpush1.bf16.msra.mxu0 %v458
  %492 = vmatprep.subr.bf16.mxu0 %v461
  %493 = vmatpush1.bf16.msra.mxu0 %v460
  %494 = vmatprep.subr.bf16.mxu0 0
  %495 = vmatpush1.bf16.msra.mxu0 0
  %496 = vmatprep.subr.bf16.mxu0 0
  %497 = vmatpush1.bf16.msra.mxu0 0
  %498 = vmatprep.subr.bf16.mxu0 0
  %499 = vmatpush1.bf16.msra.mxu0 0
  %500 = vmatprep.subr.bf16.mxu0 0
  %501 = vmatpush1.bf16.msra.mxu0 0
  %502 = vmatprep.subr.bf16.mxu0 0
  %503 = vmatpush1.bf16.msra.mxu0 0
  %504 = vmatprep.subr.bf16.mxu0 0
  %505 = vmatpush1.bf16.msra.mxu0 0
  %506 = vmatprep.subr.bf16.mxu0 0
  %507 = vmatpush1.bf16.msra.mxu0 0
  %508 = vmatprep.subr.bf16.mxu0 0
  %509 = vmatpush1.bf16.msra.mxu0 0
  %510 = vmatprep.mubr.bf16.mxu0 0
  %511 = vmatmul.mubr.bf16.gmra.mrb[0].mxu0 %v374
  %v512 = vpop.f32.mrb[0].mxu0
  %v513 = vadd.f32 0.0, %v512
  %v514 = vpop.f32.mrb[0].mxu0
  %v515 = vadd.f32 0.0, %v514
  %v516 = vpop.f32.mrb[0].mxu0
  %v517 = vadd.f32 0.0, %v516
  %v518 = vpop.f32.mrb[0].mxu0
  %v519 = vadd.f32 0.0, %v518
  %520 = vmatprep.mubr.bf16.mxu0 0
  %521 = vmatmul.mubr.bf16.gmra.mrb[0].mxu0 %v375
  %v522 = vpop.f32.mrb[0].mxu0
  %v523 = vadd.f32 0.0, %v522
  %v524 = vpop.f32.mrb[0].mxu0
  %v525 = vadd.f32 0.0, %v524
  %v526 = vpop.f32.mrb[0].mxu0
  %v527 = vadd.f32 0.0, %v526
  %v528 = vpop.f32.mrb[0].mxu0
  %v529 = vadd.f32 0.0, %v528
  %530 = vmatprep.mubr.bf16.mxu0 0
  %531 = vmatmul.mubr.bf16.gmra.mrb[0].mxu0 %v376
  %v532 = vpop.f32.mrb[0].mxu0
  %v533 = vadd.f32 0.0, %v532
  %v534 = vpop.f32.mrb[0].mxu0
  %v535 = vadd.f32 0.0, %v534
  %v536 = vpop.f32.mrb[0].mxu0
  %v537 = vadd.f32 0.0, %v536
  %v538 = vpop.f32.mrb[0].mxu0
  %v539 = vadd.f32 0.0, %v538
  %540 = vmatprep.mubr.bf16.mxu0 0
  %541 = vmatmul.mubr.bf16.gmra.mrb[0].mxu0 %v377
  %v542 = vpop.f32.mrb[0].mxu0
  %v543 = vadd.f32 0.0, %v542
  %v544 = vpop.f32.mrb[0].mxu0
  %v545 = vadd.f32 0.0, %v544
  %v546 = vpop.f32.mrb[0].mxu0
  %v547 = vadd.f32 0.0, %v546
  %v548 = vpop.f32.mrb[0].mxu0
  %v549 = vadd.f32 0.0, %v548
  %550 = vmatprep.mubr.bf16.mxu0 0
  %551 = vmatmul.mubr.bf16.gmra.mrb[0].mxu0 %v378
  %v552 = vpop.f32.mrb[0].mxu0
  %v553 = vadd.f32 0.0, %v552
  %v554 = vpop.f32.mrb[0].mxu0
  %v555 = vadd.f32 0.0, %v554
  %v556 = vpop.f32.mrb[0].mxu0
  %v557 = vadd.f32 0.0, %v556
  %v558 = vpop.f32.mrb[0].mxu0
  %v559 = vadd.f32 0.0, %v558
  %560 = vmatprep.mubr.bf16.mxu0 0
  %561 = vmatmul.mubr.bf16.gmra.mrb[0].mxu0 %v379
  %v562 = vpop.f32.mrb[0].mxu0
  %v563 = vadd.f32 0.0, %v562
  %v564 = vpop.f32.mrb[0].mxu0
  %v565 = vadd.f32 0.0, %v564
  %v566 = vpop.f32.mrb[0].mxu0
  %v567 = vadd.f32 0.0, %v566
  %v568 = vpop.f32.mrb[0].mxu0
  %v569 = vadd.f32 0.0, %v568
  %570 = vmatprep.mubr.bf16.mxu0 0
  %571 = vmatmul.mubr.bf16.gmra.mrb[0].mxu0 %v380
  %v572 = vpop.f32.mrb[0].mxu0
  %v573 = vadd.f32 0.0, %v572
  %v574 = vpop.f32.mrb[0].mxu0
  %v575 = vadd.f32 0.0, %v574
  %v576 = vpop.f32.mrb[0].mxu0
  %v577 = vadd.f32 0.0, %v576
  %v578 = vpop.f32.mrb[0].mxu0
  %v579 = vadd.f32 0.0, %v578
  %580 = vmatprep.mubr.bf16.mxu0 0
  %581 = vmatmul.mubr.bf16.gmra.mrb[0].mxu0 %v381
  %v582 = vpop.f32.mrb[0].mxu0
  %v583 = vadd.f32 0.0, %v582
  %v584 = vpop.f32.mrb[0].mxu0
  %v585 = vadd.f32 0.0, %v584
  %v586 = vpop.f32.mrb[0].mxu0
  %v587 = vadd.f32 0.0, %v586
  %v588 = vpop.f32.mrb[0].mxu0
  %v589 = vadd.f32 0.0, %v588
  %590 = vdwg.mxu0
  %v591 = vld [vmem:[%s4] sm:$0x3]
  %v593 = vlaneseq
  %v594 = vshrl.u32 %v593, 7
  %v595 = vsub.s32 0, %v594
  %v596 = vrot.slane %v591, %v595
  %v597 = vlaneseq
  %v598 = vshrl.u32 %v597, 7
  %v599 = vsub.s32 1, %v598
  %v600 = vrot.slane %v591, %v599
  %v603 = vsub.f32 %v513, %v596
  %v604 = vsub.f32 %v515, %v600
  %v605 = vsub.f32 %v517, %v596
  %v606 = vsub.f32 %v519, %v600
  %v607 = vsub.f32 %v523, %v596
  %v608 = vsub.f32 %v525, %v600
  %v609 = vsub.f32 %v527, %v596
  %v610 = vsub.f32 %v529, %v600
  %v611 = vsub.f32 %v533, %v596
  %v612 = vsub.f32 %v535, %v600
  %v613 = vsub.f32 %v537, %v596
  %v614 = vsub.f32 %v539, %v600
  %v615 = vsub.f32 %v543, %v596
  %v616 = vsub.f32 %v545, %v600
  %v617 = vsub.f32 %v547, %v596
  %v618 = vsub.f32 %v549, %v600
  %v619 = vsub.f32 %v553, %v596
  %v620 = vsub.f32 %v555, %v600
  %v621 = vsub.f32 %v557, %v596
  %v622 = vsub.f32 %v559, %v600
  %v623 = vsub.f32 %v563, %v596
  %v624 = vsub.f32 %v565, %v600
  %v625 = vsub.f32 %v567, %v596
  %v626 = vsub.f32 %v569, %v600
  %v627 = vsub.f32 %v573, %v596
  %v628 = vsub.f32 %v575, %v600
  %v629 = vsub.f32 %v577, %v596
  %v630 = vsub.f32 %v579, %v600
  %v631 = vsub.f32 %v583, %v596
  %v632 = vsub.f32 %v585, %v600
  %v633 = vsub.f32 %v587, %v596
  %v634 = vsub.f32 %v589, %v600
  %v635 = vmul.f32 %v603, %v603
  %v636 = vmul.f32 %v604, %v604
  %v637 = vmul.f32 %v605, %v605
  %v638 = vmul.f32 %v606, %v606
  %v639 = vmul.f32 %v607, %v607
  %v640 = vmul.f32 %v608, %v608
  %v641 = vmul.f32 %v609, %v609
  %v642 = vmul.f32 %v610, %v610
  %v643 = vmul.f32 %v611, %v611
  %v644 = vmul.f32 %v612, %v612
  %v645 = vmul.f32 %v613, %v613
  %v646 = vmul.f32 %v614, %v614
  %v647 = vmul.f32 %v615, %v615
  %v648 = vmul.f32 %v616, %v616
  %v649 = vmul.f32 %v617, %v617
  %v650 = vmul.f32 %v618, %v618
  %v651 = vmul.f32 %v619, %v619
  %v652 = vmul.f32 %v620, %v620
  %v653 = vmul.f32 %v621, %v621
  %v654 = vmul.f32 %v622, %v622
  %v655 = vmul.f32 %v623, %v623
  %v656 = vmul.f32 %v624, %v624
  %v657 = vmul.f32 %v625, %v625
  %v658 = vmul.f32 %v626, %v626
  %v659 = vmul.f32 %v627, %v627
  %v660 = vmul.f32 %v628, %v628
  %v661 = vmul.f32 %v629, %v629
  %v662 = vmul.f32 %v630, %v630
  %v663 = vmul.f32 %v631, %v631
  %v664 = vmul.f32 %v632, %v632
  %v665 = vmul.f32 %v633, %v633
  %v666 = vmul.f32 %v634, %v634
  %v667 = vsub.f32 0.0, %v635
  %v668 = vsub.f32 0.0, %v636
  %v669 = vsub.f32 0.0, %v637
  %v670 = vsub.f32 0.0, %v638
  %v671 = vsub.f32 0.0, %v639
  %v672 = vsub.f32 0.0, %v640
  %v673 = vsub.f32 0.0, %v641
  %v674 = vsub.f32 0.0, %v642
  %v675 = vsub.f32 0.0, %v643
  %v676 = vsub.f32 0.0, %v644
  %v677 = vsub.f32 0.0, %v645
  %v678 = vsub.f32 0.0, %v646
  %v679 = vsub.f32 0.0, %v647
  %v680 = vsub.f32 0.0, %v648
  %v681 = vsub.f32 0.0, %v649
  %v682 = vsub.f32 0.0, %v650
  %v683 = vsub.f32 0.0, %v651
  %v684 = vsub.f32 0.0, %v652
  %v685 = vsub.f32 0.0, %v653
  %v686 = vsub.f32 0.0, %v654
  %v687 = vsub.f32 0.0, %v655
  %v688 = vsub.f32 0.0, %v656
  %v689 = vsub.f32 0.0, %v657
  %v690 = vsub.f32 0.0, %v658
  %v691 = vsub.f32 0.0, %v659
  %v692 = vsub.f32 0.0, %v660
  %v693 = vsub.f32 0.0, %v661
  %v694 = vsub.f32 0.0, %v662
  %v695 = vsub.f32 0.0, %v663
  %v696 = vsub.f32 0.0, %v664
  %v697 = vsub.f32 0.0, %v665
  %v698 = vsub.f32 0.0, %v666
  %v699 = vmul.f32 %v667, 1.442695
  %v700 = vpow.pop %v699
  %v701 = vmul.f32 %v668, 1.442695
  %v702 = vpow.pop %v701
  %v703 = vmul.f32 %v669, 1.442695
  %v704 = vpow.pop %v703
  %v705 = vmul.f32 %v670, 1.442695
  %v706 = vpow.pop %v705
  %v707 = vmul.f32 %v671, 1.442695
  %v708 = vpow.pop %v707
  %v709 = vmul.f32 %v672, 1.442695
  %v710 = vpow.pop %v709
  %v711 = vmul.f32 %v673, 1.442695
  %v712 = vpow.pop %v711
  %v713 = vmul.f32 %v674, 1.442695
  %v714 = vpow.pop %v713
  %v715 = vmul.f32 %v675, 1.442695
  %v716 = vpow.pop %v715
  %v717 = vmul.f32 %v676, 1.442695
  %v718 = vpow.pop %v717
  %v719 = vmul.f32 %v677, 1.442695
  %v720 = vpow.pop %v719
  %v721 = vmul.f32 %v678, 1.442695
  %v722 = vpow.pop %v721
  %v723 = vmul.f32 %v679, 1.442695
  %v724 = vpow.pop %v723
  %v725 = vmul.f32 %v680, 1.442695
  %v726 = vpow.pop %v725
  %v727 = vmul.f32 %v681, 1.442695
  %v728 = vpow.pop %v727
  %v729 = vmul.f32 %v682, 1.442695
  %v730 = vpow.pop %v729
  %v731 = vmul.f32 %v683, 1.442695
  %v732 = vpow.pop %v731
  %v733 = vmul.f32 %v684, 1.442695
  %v734 = vpow.pop %v733
  %v735 = vmul.f32 %v685, 1.442695
  %v736 = vpow.pop %v735
  %v737 = vmul.f32 %v686, 1.442695
  %v738 = vpow.pop %v737
  %v739 = vmul.f32 %v687, 1.442695
  %v740 = vpow.pop %v739
  %v741 = vmul.f32 %v688, 1.442695
  %v742 = vpow.pop %v741
  %v743 = vmul.f32 %v689, 1.442695
  %v744 = vpow.pop %v743
  %v745 = vmul.f32 %v690, 1.442695
  %v746 = vpow.pop %v745
  %v747 = vmul.f32 %v691, 1.442695
  %v748 = vpow.pop %v747
  %v749 = vmul.f32 %v692, 1.442695
  %v750 = vpow.pop %v749
  %v751 = vmul.f32 %v693, 1.442695
  %v752 = vpow.pop %v751
  %v753 = vmul.f32 %v694, 1.442695
  %v754 = vpow.pop %v753
  %v755 = vmul.f32 %v695, 1.442695
  %v756 = vpow.pop %v755
  %v757 = vmul.f32 %v696, 1.442695
  %v758 = vpow.pop %v757
  %v759 = vmul.f32 %v697, 1.442695
  %v760 = vpow.pop %v759
  %v761 = vmul.f32 %v698, 1.442695
  %v762 = vpow.pop %v761
  %v763 = vpack.c.bf16 %v704, %v700
  %v764 = vpack.c.bf16 %v706, %v702
  %v765 = vpack.c.bf16 %v712, %v708
  %v766 = vpack.c.bf16 %v714, %v710
  %v767 = vpack.c.bf16 %v720, %v716
  %v768 = vpack.c.bf16 %v722, %v718
  %v769 = vpack.c.bf16 %v728, %v724
  %v770 = vpack.c.bf16 %v730, %v726
  %v771 = vpack.c.bf16 %v736, %v732
  %v772 = vpack.c.bf16 %v738, %v734
  %v773 = vpack.c.bf16 %v744, %v740
  %v774 = vpack.c.bf16 %v746, %v742
  %v775 = vpack.c.bf16 %v752, %v748
  %v776 = vpack.c.bf16 %v754, %v750
  %v777 = vpack.c.bf16 %v760, %v756
  %v778 = vpack.c.bf16 %v762, %v758
  %v779 = vld [vmem:[%s5] sm:$0xf]
  %v780 = vld [vmem:[%s5 + $0x4] sm:$0xf]
  %v781 = vld [vmem:[%s5 + $0x8] sm:$0xf]
  %v782 = vld [vmem:[%s5 + $0xc] sm:$0xf]
  %v783 = vld [vmem:[%s5 + $0x10] sm:$0xf]
  %v784 = vld [vmem:[%s5 + $0x14] sm:$0xf]
  %v785 = vld [vmem:[%s5 + $0x18] sm:$0xf]
  %v786 = vld [vmem:[%s5 + $0x1c] sm:$0xf]
  %v787 = vld [vmem:[%s5 + $0x20] sm:$0xf]
  %v788 = vld [vmem:[%s5 + $0x24] sm:$0xf]
  %v789 = vld [vmem:[%s5 + $0x28] sm:$0xf]
  %v790 = vld [vmem:[%s5 + $0x2c] sm:$0xf]
  %v791 = vld [vmem:[%s5 + $0x30] sm:$0xf]
  %v792 = vld [vmem:[%s5 + $0x34] sm:$0xf]
  %v793 = vld [vmem:[%s5 + $0x38] sm:$0xf]
  %v794 = vld [vmem:[%s5 + $0x3c] sm:$0xf]
  %v795 = vld [vmem:[%s5 + $0x40] sm:$0xf]
  %v796 = vld [vmem:[%s5 + $0x44] sm:$0xf]
  %v797 = vld [vmem:[%s5 + $0x48] sm:$0xf]
  %v798 = vld [vmem:[%s5 + $0x4c] sm:$0xf]
  %v799 = vld [vmem:[%s5 + $0x50] sm:$0xf]
  %v800 = vld [vmem:[%s5 + $0x54] sm:$0xf]
  %v801 = vld [vmem:[%s5 + $0x58] sm:$0xf]
  %v802 = vld [vmem:[%s5 + $0x5c] sm:$0xf]
  %v803 = vld [vmem:[%s5 + $0x60] sm:$0xf]
  %v804 = vld [vmem:[%s5 + $0x64] sm:$0xf]
  %v805 = vld [vmem:[%s5 + $0x68] sm:$0xf]
  %v806 = vld [vmem:[%s5 + $0x6c] sm:$0xf]
  %v807 = vld [vmem:[%s5 + $0x70] sm:$0xf]
  %v808 = vld [vmem:[%s5 + $0x74] sm:$0xf]
  %v809 = vld [vmem:[%s5 + $0x78] sm:$0xf]
  %v810 = vld [vmem:[%s5 + $0x7c] sm:$0xf]
  %v843 = vunpack.c.l.b16 %v779
  %v844 = vunpack.c.l.b16 %v780
  %v845 = vunpack.c.l.b16 %v781
  %v846 = vunpack.c.l.b16 %v782
  %v847 = vunpack.c.l.b16 %v783
  %v848 = vunpack.c.l.b16 %v784
  %v849 = vunpack.c.l.b16 %v785
  %v850 = vunpack.c.l.b16 %v786
  %v851 = vunpack.c.l.b16 %v787
  %v852 = vunpack.c.l.b16 %v788
  %v853 = vunpack.c.l.b16 %v789
  %v854 = vunpack.c.l.b16 %v790
  %v855 = vunpack.c.l.b16 %v791
  %v856 = vunpack.c.l.b16 %v792
  %v857 = vunpack.c.l.b16 %v793
  %v858 = vunpack.c.l.b16 %v794
  %v859 = vunpack.c.l.b16 %v795
  %v860 = vunpack.c.l.b16 %v796
  %v861 = vunpack.c.l.b16 %v797
  %v862 = vunpack.c.l.b16 %v798
  %v863 = vunpack.c.l.b16 %v799
  %v864 = vunpack.c.l.b16 %v800
  %v865 = vunpack.c.l.b16 %v801
  %v866 = vunpack.c.l.b16 %v802
  %v867 = vunpack.c.l.b16 %v803
  %v868 = vunpack.c.l.b16 %v804
  %v869 = vunpack.c.l.b16 %v805
  %v870 = vunpack.c.l.b16 %v806
  %v871 = vunpack.c.l.b16 %v807
  %v872 = vunpack.c.l.b16 %v808
  %v873 = vunpack.c.l.b16 %v809
  %v874 = vunpack.c.l.b16 %v810
  %v875 = vpack.c.b16 %v844, %v843
  %v876 = vpack.c.b16 %v846, %v845
  %v877 = vpack.c.b16 %v848, %v847
  %v878 = vpack.c.b16 %v850, %v849
  %v879 = vpack.c.b16 %v852, %v851
  %v880 = vpack.c.b16 %v854, %v853
  %v881 = vpack.c.b16 %v856, %v855
  %v882 = vpack.c.b16 %v858, %v857
  %v883 = vpack.c.b16 %v860, %v859
  %v884 = vpack.c.b16 %v862, %v861
  %v885 = vpack.c.b16 %v864, %v863
  %v886 = vpack.c.b16 %v866, %v865
  %v887 = vpack.c.b16 %v868, %v867
  %v888 = vpack.c.b16 %v870, %v869
  %v889 = vpack.c.b16 %v872, %v871
  %v890 = vpack.c.b16 %v874, %v873
  %907 = vmatprep.subr.bf16.mxu0 0
  %908 = vmatpush1.bf16.msra.mxu0 %v875
  %909 = vmatprep.subr.bf16.mxu0 0
  %910 = vmatpush1.bf16.msra.mxu0 %v876
  %911 = vmatprep.subr.bf16.mxu0 0
  %912 = vmatpush1.bf16.msra.mxu0 %v877
  %913 = vmatprep.subr.bf16.mxu0 0
  %914 = vmatpush1.bf16.msra.mxu0 %v878
  %915 = vmatprep.subr.bf16.mxu0 0
  %916 = vmatpush1.bf16.msra.mxu0 %v879
  %917 = vmatprep.subr.bf16.mxu0 0
  %918 = vmatpush1.bf16.msra.mxu0 %v880
  %919 = vmatprep.subr.bf16.mxu0 0
  %920 = vmatpush1.bf16.msra.mxu0 %v881
  %921 = vmatprep.subr.bf16.mxu0 0
  %922 = vmatpush1.bf16.msra.mxu0 %v882
  %923 = vmatprep.subr.bf16.mxu0 0
  %924 = vmatpush1.bf16.msra.mxu0 %v883
  %925 = vmatprep.subr.bf16.mxu0 0
  %926 = vmatpush1.bf16.msra.mxu0 %v884
  %927 = vmatprep.subr.bf16.mxu0 0
  %928 = vmatpush1.bf16.msra.mxu0 %v885
  %929 = vmatprep.subr.bf16.mxu0 0
  %930 = vmatpush1.bf16.msra.mxu0 %v886
  %931 = vmatprep.subr.bf16.mxu0 0
  %932 = vmatpush1.bf16.msra.mxu0 %v887
  %933 = vmatprep.subr.bf16.mxu0 0
  %934 = vmatpush1.bf16.msra.mxu0 %v888
  %935 = vmatprep.subr.bf16.mxu0 0
  %936 = vmatpush1.bf16.msra.mxu0 %v889
  %937 = vmatprep.subr.bf16.mxu0 0
  %938 = vmatpush1.bf16.msra.mxu0 %v890
  %939 = vmatprep.mubr.bf16.mxu0 %v764
  %940 = vmatmul.mubr.bf16.gmra.mrb[0].mxu0 %v763
  %v941 = vpop.f32.mrb[0].mxu0
  %v942 = vadd.f32 0.0, %v941
  %v943 = vpop.f32.mrb[0].mxu0
  %v944 = vpop.f32.mrb[0].mxu0
  %v945 = vadd.f32 0.0, %v944
  %v946 = vpop.f32.mrb[0].mxu0
  %947 = vmatprep.mubr.bf16.mxu0 %v766
  %948 = vmatmul.mubr.bf16.gmra.mrb[0].mxu0 %v765
  %v949 = vpop.f32.mrb[0].mxu0
  %v950 = vadd.f32 0.0, %v949
  %v951 = vpop.f32.mrb[0].mxu0
  %v952 = vpop.f32.mrb[0].mxu0
  %v953 = vadd.f32 0.0, %v952
  %v954 = vpop.f32.mrb[0].mxu0
  %955 = vmatprep.mubr.bf16.mxu0 %v768
  %956 = vmatmul.mubr.bf16.gmra.mrb[0].mxu0 %v767
  %v957 = vpop.f32.mrb[0].mxu0
  %v958 = vadd.f32 0.0, %v957
  %v959 = vpop.f32.mrb[0].mxu0
  %v960 = vpop.f32.mrb[0].mxu0
  %v961 = vadd.f32 0.0, %v960
  %v962 = vpop.f32.mrb[0].mxu0
  %963 = vmatprep.mubr.bf16.mxu0 %v770
  %964 = vmatmul.mubr.bf16.gmra.mrb[0].mxu0 %v769
  %v965 = vpop.f32.mrb[0].mxu0
  %v966 = vadd.f32 0.0, %v965
  %v967 = vpop.f32.mrb[0].mxu0
  %v968 = vpop.f32.mrb[0].mxu0
  %v969 = vadd.f32 0.0, %v968
  %v970 = vpop.f32.mrb[0].mxu0
  %971 = vmatprep.mubr.bf16.mxu0 %v772
  %972 = vmatmul.mubr.bf16.gmra.mrb[0].mxu0 %v771
  %v973 = vpop.f32.mrb[0].mxu0
  %v974 = vadd.f32 0.0, %v973
  %v975 = vpop.f32.mrb[0].mxu0
  %v976 = vpop.f32.mrb[0].mxu0
  %v977 = vadd.f32 0.0, %v976
  %v978 = vpop.f32.mrb[0].mxu0
  %979 = vmatprep.mubr.bf16.mxu0 %v774
  %980 = vmatmul.mubr.bf16.gmra.mrb[0].mxu0 %v773
  %v981 = vpop.f32.mrb[0].mxu0
  %v982 = vadd.f32 0.0, %v981
  %v983 = vpop.f32.mrb[0].mxu0
  %v984 = vpop.f32.mrb[0].mxu0
  %v985 = vadd.f32 0.0, %v984
  %v986 = vpop.f32.mrb[0].mxu0
  %987 = vmatprep.mubr.bf16.mxu0 %v776
  %988 = vmatmul.mubr.bf16.gmra.mrb[0].mxu0 %v775
  %v989 = vpop.f32.mrb[0].mxu0
  %v990 = vadd.f32 0.0, %v989
  %v991 = vpop.f32.mrb[0].mxu0
  %v992 = vpop.f32.mrb[0].mxu0
  %v993 = vadd.f32 0.0, %v992
  %v994 = vpop.f32.mrb[0].mxu0
  %995 = vmatprep.mubr.bf16.mxu0 %v778
  %996 = vmatmul.mubr.bf16.gmra.mrb[0].mxu0 %v777
  %v997 = vpop.f32.mrb[0].mxu0
  %v998 = vadd.f32 0.0, %v997
  %v999 = vpop.f32.mrb[0].mxu0
  %v1000 = vpop.f32.mrb[0].mxu0
  %v1001 = vadd.f32 0.0, %v1000
  %v1002 = vpop.f32.mrb[0].mxu0
  %1003 = vdwg.mxu0
  %v1004 = vadd.f32 %v211, %v942
  %v1005 = vadd.f32 %v215, %v945
  %v1006 = vadd.f32 %v221, %v950
  %v1007 = vadd.f32 %v225, %v953
  %v1008 = vadd.f32 %v231, %v958
  %v1009 = vadd.f32 %v235, %v961
  %v1010 = vadd.f32 %v241, %v966
  %v1011 = vadd.f32 %v245, %v969
  %v1012 = vadd.f32 %v251, %v974
  %v1013 = vadd.f32 %v255, %v977
  %v1014 = vadd.f32 %v261, %v982
  %v1015 = vadd.f32 %v265, %v985
  %v1016 = vadd.f32 %v271, %v990
  %v1017 = vadd.f32 %v275, %v993
  %v1018 = vadd.f32 %v281, %v998
  %v1019 = vadd.f32 %v285, %v1001
  %v1020 = vld [vmem:[%s6] sm:$0x1]
  %v1022 = vlaneseq
  %v1023 = vshrl.u32 %v1022, 7
  %v1024 = vsub.s32 0, %v1023
  %v1025 = vrot.slane %v1020, %v1024
  %v1027 = vsub.f32 %v1004, %v1025
  %v1028 = vsub.f32 %v1005, %v1025
  %v1029 = vsub.f32 %v1006, %v1025
  %v1030 = vsub.f32 %v1007, %v1025
  %v1031 = vsub.f32 %v1008, %v1025
  %v1032 = vsub.f32 %v1009, %v1025
  %v1033 = vsub.f32 %v1010, %v1025
  %v1034 = vsub.f32 %v1011, %v1025
  %v1035 = vsub.f32 %v1012, %v1025
  %v1036 = vsub.f32 %v1013, %v1025
  %v1037 = vsub.f32 %v1014, %v1025
  %v1038 = vsub.f32 %v1015, %v1025
  %v1039 = vsub.f32 %v1016, %v1025
  %v1040 = vsub.f32 %v1017, %v1025
  %v1041 = vsub.f32 %v1018, %v1025
  %v1042 = vsub.f32 %v1019, %v1025
  %v1043 = vmul.f32 %v1027, %v1027
  %v1044 = vmul.f32 %v1028, %v1028
  %v1045 = vmul.f32 %v1029, %v1029
  %v1046 = vmul.f32 %v1030, %v1030
  %v1047 = vmul.f32 %v1031, %v1031
  %v1048 = vmul.f32 %v1032, %v1032
  %v1049 = vmul.f32 %v1033, %v1033
  %v1050 = vmul.f32 %v1034, %v1034
  %v1051 = vmul.f32 %v1035, %v1035
  %v1052 = vmul.f32 %v1036, %v1036
  %v1053 = vmul.f32 %v1037, %v1037
  %v1054 = vmul.f32 %v1038, %v1038
  %v1055 = vmul.f32 %v1039, %v1039
  %v1056 = vmul.f32 %v1040, %v1040
  %v1057 = vmul.f32 %v1041, %v1041
  %v1058 = vmul.f32 %v1042, %v1042
  %v1059 = vsub.f32 0.0, %v1043
  %v1060 = vsub.f32 0.0, %v1044
  %v1061 = vsub.f32 0.0, %v1045
  %v1062 = vsub.f32 0.0, %v1046
  %v1063 = vsub.f32 0.0, %v1047
  %v1064 = vsub.f32 0.0, %v1048
  %v1065 = vsub.f32 0.0, %v1049
  %v1066 = vsub.f32 0.0, %v1050
  %v1067 = vsub.f32 0.0, %v1051
  %v1068 = vsub.f32 0.0, %v1052
  %v1069 = vsub.f32 0.0, %v1053
  %v1070 = vsub.f32 0.0, %v1054
  %v1071 = vsub.f32 0.0, %v1055
  %v1072 = vsub.f32 0.0, %v1056
  %v1073 = vsub.f32 0.0, %v1057
  %v1074 = vsub.f32 0.0, %v1058
  %v1075 = vmul.f32 %v1059, 1.442695
  %v1076 = vpow.pop %v1075
  %v1077 = vmul.f32 %v1060, 1.442695
  %v1078 = vpow.pop %v1077
  %v1079 = vmul.f32 %v1061, 1.442695
  %v1080 = vpow.pop %v1079
  %v1081 = vmul.f32 %v1062, 1.442695
  %v1082 = vpow.pop %v1081
  %v1083 = vmul.f32 %v1063, 1.442695
  %v1084 = vpow.pop %v1083
  %v1085 = vmul.f32 %v1064, 1.442695
  %v1086 = vpow.pop %v1085
  %v1087 = vmul.f32 %v1065, 1.442695
  %v1088 = vpow.pop %v1087
  %v1089 = vmul.f32 %v1066, 1.442695
  %v1090 = vpow.pop %v1089
  %v1091 = vmul.f32 %v1067, 1.442695
  %v1092 = vpow.pop %v1091
  %v1093 = vmul.f32 %v1068, 1.442695
  %v1094 = vpow.pop %v1093
  %v1095 = vmul.f32 %v1069, 1.442695
  %v1096 = vpow.pop %v1095
  %v1097 = vmul.f32 %v1070, 1.442695
  %v1098 = vpow.pop %v1097
  %v1099 = vmul.f32 %v1071, 1.442695
  %v1100 = vpow.pop %v1099
  %v1101 = vmul.f32 %v1072, 1.442695
  %v1102 = vpow.pop %v1101
  %v1103 = vmul.f32 %v1073, 1.442695
  %v1104 = vpow.pop %v1103
  %v1105 = vmul.f32 %v1074, 1.442695
  %v1106 = vpow.pop %v1105
  %v1107 = vpack.c.bf16 %v1078, %v1076
  %v1108 = vpack.c.bf16 %v1082, %v1080
  %v1109 = vpack.c.bf16 %v1086, %v1084
  %v1110 = vpack.c.bf16 %v1090, %v1088
  %v1111 = vpack.c.bf16 %v1094, %v1092
  %v1112 = vpack.c.bf16 %v1098, %v1096
  %v1113 = vpack.c.bf16 %v1102, %v1100
  %v1114 = vpack.c.bf16 %v1106, %v1104
  %v1115 = vld [vmem:[%s7] sm:$0xf]
  %v1116 = vld [vmem:[%s7 + $0x4] sm:$0xf]
  %v1117 = vld [vmem:[%s7 + $0x8] sm:$0xf]
  %v1118 = vld [vmem:[%s7 + $0xc] sm:$0xf]
  %v1119 = vld [vmem:[%s7 + $0x10] sm:$0xf]
  %v1120 = vld [vmem:[%s7 + $0x14] sm:$0xf]
  %v1121 = vld [vmem:[%s7 + $0x18] sm:$0xf]
  %v1122 = vld [vmem:[%s7 + $0x1c] sm:$0xf]
  %v1123 = vld [vmem:[%s7 + $0x20] sm:$0xf]
  %v1124 = vld [vmem:[%s7 + $0x24] sm:$0xf]
  %v1125 = vld [vmem:[%s7 + $0x28] sm:$0xf]
  %v1126 = vld [vmem:[%s7 + $0x2c] sm:$0xf]
  %v1127 = vld [vmem:[%s7 + $0x30] sm:$0xf]
  %v1128 = vld [vmem:[%s7 + $0x34] sm:$0xf]
  %v1129 = vld [vmem:[%s7 + $0x38] sm:$0xf]
  %v1130 = vld [vmem:[%s7 + $0x3c] sm:$0xf]
  %v1131 = vld [vmem:[%s8] sm:$0x1]
  %v1133 = vlaneseq
  %v1134 = vshrl.u32 %v1133, 7
  %v1135 = vsub.s32 0, %v1134
  %v1136 = vrot.slane %v1131, %v1135
  %v1154 = vunpack.c.l.b16 %v1115
  %v1155 = vunpack.c.l.b16 %v1116
  %v1156 = vunpack.c.l.b16 %v1117
  %v1157 = vunpack.c.l.b16 %v1118
  %v1158 = vunpack.c.l.b16 %v1119
  %v1159 = vunpack.c.l.b16 %v1120
  %v1160 = vunpack.c.l.b16 %v1121
  %v1161 = vunpack.c.l.b16 %v1122
  %v1162 = vunpack.c.l.b16 %v1123
  %v1163 = vunpack.c.l.b16 %v1124
  %v1164 = vunpack.c.l.b16 %v1125
  %v1165 = vunpack.c.l.b16 %v1126
  %v1166 = vunpack.c.l.b16 %v1127
  %v1167 = vunpack.c.l.b16 %v1128
  %v1168 = vunpack.c.l.b16 %v1129
  %v1169 = vunpack.c.l.b16 %v1130
  %v1170 = vpack.c.b16 %v1155, %v1154
  %v1171 = vpack.c.b16 %v1157, %v1156
  %v1172 = vpack.c.b16 %v1159, %v1158
  %v1173 = vpack.c.b16 %v1161, %v1160
  %v1174 = vpack.c.b16 %v1163, %v1162
  %v1175 = vpack.c.b16 %v1165, %v1164
  %v1176 = vpack.c.b16 %v1167, %v1166
  %v1177 = vpack.c.b16 %v1169, %v1168
  %1186 = vmatprep.subr.bf16.mxu0 0
  %1187 = vmatpush1.bf16.msra.mxu0 %v1170
  %1188 = vmatprep.subr.bf16.mxu0 0
  %1189 = vmatpush1.bf16.msra.mxu0 %v1171
  %1190 = vmatprep.subr.bf16.mxu0 0
  %1191 = vmatpush1.bf16.msra.mxu0 %v1172
  %1192 = vmatprep.subr.bf16.mxu0 0
  %1193 = vmatpush1.bf16.msra.mxu0 %v1173
  %1194 = vmatprep.subr.bf16.mxu0 0
  %1195 = vmatpush1.bf16.msra.mxu0 %v1174
  %1196 = vmatprep.subr.bf16.mxu0 0
  %1197 = vmatpush1.bf16.msra.mxu0 %v1175
  %1198 = vmatprep.subr.bf16.mxu0 0
  %1199 = vmatpush1.bf16.msra.mxu0 %v1176
  %1200 = vmatprep.subr.bf16.mxu0 0
  %1201 = vmatpush1.bf16.msra.mxu0 %v1177
  %1202 = vmatprep.subr.bf16.mxu0 0
  %1203 = vmatpush1.bf16.msra.mxu0 0
  %1204 = vmatprep.subr.bf16.mxu0 0
  %1205 = vmatpush1.bf16.msra.mxu0 0
  %1206 = vmatprep.subr.bf16.mxu0 0
  %1207 = vmatpush1.bf16.msra.mxu0 0
  %1208 = vmatprep.subr.bf16.mxu0 0
  %1209 = vmatpush1.bf16.msra.mxu0 0
  %1210 = vmatprep.subr.bf16.mxu0 0
  %1211 = vmatpush1.bf16.msra.mxu0 0
  %1212 = vmatprep.subr.bf16.mxu0 0
  %1213 = vmatpush1.bf16.msra.mxu0 0
  %1214 = vmatprep.subr.bf16.mxu0 0
  %1215 = vmatpush1.bf16.msra.mxu0 0
  %1216 = vmatprep.subr.bf16.mxu0 0
  %1217 = vmatpush1.bf16.msra.mxu0 0
  %1218 = vmatprep.mubr.bf16.mxu0 0
  %1219 = vmatmul.mubr.bf16.gmra.mrb[0].mxu0 %v1107
  %v1220 = vpop.f32.mrb[0].mxu0
  %v1221 = vadd.f32 %v1136, %v1220
  %v1222 = vpop.f32.mrb[0].mxu0
  %v1223 = vpop.f32.mrb[0].mxu0
  %v1224 = vadd.f32 %v1136, %v1223
  %v1225 = vpop.f32.mrb[0].mxu0
  %1226 = vmatprep.mubr.bf16.mxu0 0
  %1227 = vmatmul.mubr.bf16.gmra.mrb[0].mxu0 %v1108
  %v1228 = vpop.f32.mrb[0].mxu0
  %v1229 = vadd.f32 %v1136, %v1228
  %v1230 = vpop.f32.mrb[0].mxu0
  %v1231 = vpop.f32.mrb[0].mxu0
  %v1232 = vadd.f32 %v1136, %v1231
  %v1233 = vpop.f32.mrb[0].mxu0
  %1234 = vmatprep.mubr.bf16.mxu0 0
  %1235 = vmatmul.mubr.bf16.gmra.mrb[0].mxu0 %v1109
  %v1236 = vpop.f32.mrb[0].mxu0
  %v1237 = vadd.f32 %v1136, %v1236
  %v1238 = vpop.f32.mrb[0].mxu0
  %v1239 = vpop.f32.mrb[0].mxu0
  %v1240 = vadd.f32 %v1136, %v1239
  %v1241 = vpop.f32.mrb[0].mxu0
  %1242 = vmatprep.mubr.bf16.mxu0 0
  %1243 = vmatmul.mubr.bf16.gmra.mrb[0].mxu0 %v1110
  %v1244 = vpop.f32.mrb[0].mxu0
  %v1245 = vadd.f32 %v1136, %v1244
  %v1246 = vpop.f32.mrb[0].mxu0
  %v1247 = vpop.f32.mrb[0].mxu0
  %v1248 = vadd.f32 %v1136, %v1247
  %v1249 = vpop.f32.mrb[0].mxu0
  %1250 = vmatprep.mubr.bf16.mxu0 0
  %1251 = vmatmul.mubr.bf16.gmra.mrb[0].mxu0 %v1111
  %v1252 = vpop.f32.mrb[0].mxu0
  %v1253 = vadd.f32 %v1136, %v1252
  %v1254 = vpop.f32.mrb[0].mxu0
  %v1255 = vpop.f32.mrb[0].mxu0
  %v1256 = vadd.f32 %v1136, %v1255
  %v1257 = vpop.f32.mrb[0].mxu0
  %1258 = vmatprep.mubr.bf16.mxu0 0
  %1259 = vmatmul.mubr.bf16.gmra.mrb[0].mxu0 %v1112
  %v1260 = vpop.f32.mrb[0].mxu0
  %v1261 = vadd.f32 %v1136, %v1260
  %v1262 = vpop.f32.mrb[0].mxu0
  %v1263 = vpop.f32.mrb[0].mxu0
  %v1264 = vadd.f32 %v1136, %v1263
  %v1265 = vpop.f32.mrb[0].mxu0
  %1266 = vmatprep.mubr.bf16.mxu0 0
  %1267 = vmatmul.mubr.bf16.gmra.mrb[0].mxu0 %v1113
  %v1268 = vpop.f32.mrb[0].mxu0
  %v1269 = vadd.f32 %v1136, %v1268
  %v1270 = vpop.f32.mrb[0].mxu0
  %v1271 = vpop.f32.mrb[0].mxu0
  %v1272 = vadd.f32 %v1136, %v1271
  %v1273 = vpop.f32.mrb[0].mxu0
  %1274 = vmatprep.mubr.bf16.mxu0 0
  %1275 = vmatmul.mubr.bf16.gmra.mrb[0].mxu0 %v1114
  %v1276 = vpop.f32.mrb[0].mxu0
  %v1277 = vadd.f32 %v1136, %v1276
  %v1278 = vpop.f32.mrb[0].mxu0
  %v1279 = vpop.f32.mrb[0].mxu0
  %v1280 = vadd.f32 %v1136, %v1279
  %v1281 = vpop.f32.mrb[0].mxu0
  %1282 = vdwg.mxu0
  %vm1283 = vcmask 64512
  %1284 = vst.msk [vmem:[%s9] sm:$0xff] %vm1283, %v1221
  %1285 = vst.msk [vmem:[%s9 + $0x8] sm:$0xff] %vm1283, %v1224
  %1286 = vst.msk [vmem:[%s9 + $0x10] sm:$0xff] %vm1283, %v1229
  %1287 = vst.msk [vmem:[%s9 + $0x18] sm:$0xff] %vm1283, %v1232
  %1288 = vst.msk [vmem:[%s9 + $0x20] sm:$0xff] %vm1283, %v1237
  %1289 = vst.msk [vmem:[%s9 + $0x28] sm:$0xff] %vm1283, %v1240
  %1290 = vst.msk [vmem:[%s9 + $0x30] sm:$0xff] %vm1283, %v1245
  %1291 = vst.msk [vmem:[%s9 + $0x38] sm:$0xff] %vm1283, %v1248
  %1292 = vst.msk [vmem:[%s9 + $0x40] sm:$0xff] %vm1283, %v1253
  %1293 = vst.msk [vmem:[%s9 + $0x48] sm:$0xff] %vm1283, %v1256
  %1294 = vst.msk [vmem:[%s9 + $0x50] sm:$0xff] %vm1283, %v1261
  %1295 = vst.msk [vmem:[%s9 + $0x58] sm:$0xff] %vm1283, %v1264
  %1296 = vst.msk [vmem:[%s9 + $0x60] sm:$0xff] %vm1283, %v1269
  %1297 = vst.msk [vmem:[%s9 + $0x68] sm:$0xff] %vm1283, %v1272
  %1298 = vst.msk [vmem:[%s9 + $0x70] sm:$0xff] %vm1283, %v1277
  %1299 = vst.msk [vmem:[%s9 + $0x78] sm:$0xff] %vm1283, %v1280
  // Predicated region
  $region38: #{mlpe_forward.1} parent=0 // pred_check
    _
  $region39: #{mlpe_forward.1} parent=0 // pred_check_branch
    %1301 = sbr.rel (0) target = $region41
  $region40: #{mlpe_forward.1} parent=0 // pred_region
    _
  $region41: #{mlpe_forward.1} parent=0 // pred_fallthru
    _
  // Predicated region
  $region42: #{mlpe_forward.1} parent=0 // pred_check
    _
  $region43: #{mlpe_forward.1} parent=0 // pred_check_branch
    %1303 = sbr.rel (0) target = $region45
  $region44: #{mlpe_forward.1} parent=0 // pred_region
    _
  $region45: #{mlpe_forward.1} parent=0 // pred_fallthru
    _

</llo_original>
